<compile_context>
chip_gen: v7x
topology: tpu7x:2x2x1
jax: 0.10.0
libtpu: 0.0.40
codegen_flags: <defaults>
</compile_context>

<pallas_src>
import functools

import numpy as np
import jax
import jax.numpy as jnp
from jax import lax
from jax.experimental import pallas as pl
from jax.experimental.pallas import tpu as pltpu

_LANE = 128
_SUB = 8
_NEG_BIG = -1e30  # bias for padded experts: softmax prob becomes exactly 0


def _round_up(x, m):
    return ((x + m - 1) // m) * m


def _vmem_limit_bytes():
    """Raise the scoped-VMEM cap above the 16/32 MiB defaults, but stay well
    below physical VMEM (64 MiB on v7x, 128 MiB on v5e/v6e)."""
    try:
        cap = pltpu.get_tpu_info().vmem_capacity_bytes
    except Exception:
        cap = 64 * 1024 * 1024
    return int(min(64 * 1024 * 1024, (cap * 3) // 4))


def _pick_tile_t(T, D, E_pad, itemsize, vmem_limit):
    """Token tile for phase 1: biggest tile whose double-buffered working set
    fits ~3/4 of the scoped-VMEM budget.

    Per grid step (bytes):
      x block       : 2 * tile * D * itemsize      (double-buffered input)
      logits, probs : 2 * 2 * tile * E_pad * 4     (double-buffered outputs)
      top-k outputs : 2 * 2 * tile * 128 * 4       (lane-padded in VMEM)
      W, b          : 2 * D * E_pad * 4            (resident)
    """
    if T <= 1024:
        return T
    budget = (vmem_limit * 3) // 4 - 2 * D * E_pad * 4
    per_tok = 2 * D * itemsize + 4 * E_pad * 4 + 4 * _LANE * 4
    tile = max(_SUB, budget // max(1, per_tok))
    tile = int(min(1024, tile))
    return max(_SUB, tile - (tile % _SUB))


# --------------------------------------------------------------------------
# Phase 1: linear + softmax + per-token top-k   (tiled over tokens)
# --------------------------------------------------------------------------
def _logits_topk_kernel(x_ref, w_ref, b_ref,
                        logits_ref, probs_ref, tkp_ref, tki_ref, *, k):
    # ---- linear layer (MXU; f32 accumulate, works for bf16 inputs too) ----
    logits = jnp.dot(x_ref[...], w_ref[...], preferred_element_type=jnp.float32)
    logits = logits + b_ref[...].astype(jnp.float32)
    logits_ref[...] = logits

    # ---- softmax over (padded) experts ----
    mx = jnp.max(logits, axis=-1, keepdims=True)
    ex = jnp.exp(logits - mx)                      # padded cols -> exactly 0
    probs = ex / jnp.sum(ex, axis=-1, keepdims=True)
    probs_ref[...] = probs

    # ---- per-token top-k (greedy argmax; ties -> smaller expert id) ----
    # k is tiny (1-8): static unroll; the k columns are merged into vreg
    # accumulators and each output ref is stored exactly once (fewer masked
    # stores than per-rank column writes).  Padded experts (prob 0, larger
    # index) can never win because k <= num real experts.
    Tb, Ep = probs.shape
    e_iota = lax.broadcasted_iota(jnp.int32, (Tb, Ep), 1)
    r_iota = lax.broadcasted_iota(jnp.int32, (Tb, k), 1)
    chosen = jnp.zeros((Tb, Ep), dtype=jnp.bool_)
    tkp = jnp.zeros((Tb, k), jnp.float32)
    tki = jnp.zeros((Tb, k), jnp.int32)
    for r in range(k):
        cur = jnp.where(chosen, -1.0, probs)
        best = jnp.max(cur, axis=-1, keepdims=True)                    # (Tb,1)
        sel = jnp.min(jnp.where(cur == best, e_iota, Ep),
                      axis=-1, keepdims=True)                          # (Tb,1)
        chosen = jnp.logical_or(chosen, e_iota == sel)
        tkp = jnp.where(r_iota == r, best, tkp)
        tki = jnp.where(r_iota == r, sel, tki)
    tkp_ref[...] = tkp
    tki_ref[...] = tki


# --------------------------------------------------------------------------
# Phase 2: capacity-limited per-expert selection on lane-dense (E, N_pad)
# --------------------------------------------------------------------------
def _capacity_select_kernel(tkp_ref, tki_ref, ep_ref, ei_ref, *, k):
    E, C = ep_ref.shape
    _, N = tkp_ref.shape                       # N = round_up(T*k, 128)

    pr = tkp_ref[...]                          # (1, N) float32
    ir = tki_ref[...]                          # (1, N) int32 (-1 on padding)
    e_row = lax.broadcasted_iota(jnp.int32, (E, N), 0)
    jkey = lax.broadcasted_iota(jnp.int32, (E, N), 1)   # flat slot j = t*k + r
    # S[e, j] = prob of slot j if it chose expert e else -1 (probs are >= 0).
    # Padded slots have id -1 -> never match -> stay at -1.
    S0 = jnp.where(ir == e_row, pr, -1.0)      # (E, N), lane-dense

    c_iota = lax.broadcasted_iota(jnp.int32, (E, C), 1)
    ep0 = jnp.zeros((E, C), jnp.float32)
    ei0 = jnp.full((E, C), -1, jnp.int32)

    def body(c, carry):
        S, ep_acc, ei_acc = carry
        best = jnp.max(S, axis=-1, keepdims=True)                        # (E,1)
        jsel = jnp.min(jnp.where(S == best, jkey, N),
                       axis=-1, keepdims=True)                           # (E,1)
        S = jnp.where(jkey == jsel, -1.0, S)   # retire the selected slot
        valid = best >= 0.0                    # -1 sentinel -> expert exhausted
        col_p = jnp.where(valid, best, 0.0)
        col_i = jnp.where(valid, jsel // k, -1)
        ep_acc = jnp.where(c_iota == c, col_p, ep_acc)
        ei_acc = jnp.where(c_iota == c, col_i, ei_acc)
        return S, ep_acc, ei_acc

    _, ep, ei = lax.fori_loop(0, C, body, (S0, ep0, ei0), unroll=(C <= 8))
    ep_ref[...] = ep
    ei_ref[...] = ei


# --------------------------------------------------------------------------
# Wrapper
# --------------------------------------------------------------------------
def topk_router(x, w, b, k, expert_capacity, *, tile_t=None):
    """x: (T, D); w: (D, E); b: (E,).  Returns (logits, probs, expert_probs,
    expert_indices) exactly like TopKRouter.forward."""
    T, D = x.shape
    E = w.shape[1]
    k = min(int(k), E)
    C = int(expert_capacity)

    vmem_limit = _vmem_limit_bytes()
    # Pad the expert axis to a lane-dense multiple of 128 (dense MXU N, dense
    # stores); padded experts get prob 0 and always lose ties to real experts.
    E_pad = _round_up(E, _LANE)
    if tile_t is None:
        tile_t = _pick_tile_t(T, D, E_pad, jnp.dtype(x.dtype).itemsize, vmem_limit)
    grid_t = pl.cdiv(T, tile_t)

    if E_pad != E:
        w = jnp.pad(w, ((0, 0), (0, E_pad - E)))
        b = jnp.concatenate([b, jnp.full((E_pad - E,), _NEG_BIG, b.dtype)])
    b2 = b.reshape(1, E_pad)

    logits_p, probs_p, tkp, tki = pl.pallas_call(
        functools.partial(_logits_topk_kernel, k=k),
        grid_spec=pltpu.PrefetchScalarGridSpec(
            num_scalar_prefetch=0,
            grid=(grid_t,),
            in_specs=[
                pl.BlockSpec((tile_t, D), lambda i: (i, 0)),     # x: streamed
                pl.BlockSpec((D, E_pad), lambda i: (0, 0)),      # W: resident
                pl.BlockSpec((1, E_pad), lambda i: (0, 0)),      # b: resident
            ],
            out_specs=[
                pl.BlockSpec((tile_t, E_pad), lambda i: (i, 0)),
                pl.BlockSpec((tile_t, E_pad), lambda i: (i, 0)),
                pl.BlockSpec((tile_t, k), lambda i: (i, 0)),
                pl.BlockSpec((tile_t, k), lambda i: (i, 0)),
            ],
        ),
        out_shape=(
            jax.ShapeDtypeStruct((T, E_pad), jnp.float32),
            jax.ShapeDtypeStruct((T, E_pad), jnp.float32),
            jax.ShapeDtypeStruct((T, k), jnp.float32),
            jax.ShapeDtypeStruct((T, k), jnp.int32),
        ),
        compiler_params=pltpu.CompilerParams(
            dimension_semantics=("parallel",),
            vmem_limit_bytes=vmem_limit,
        ),
    )(x, w, b2)

    logits = logits_p[:, :E]
    probs = probs_p[:, :E]

    # Layout plumbing only: torch-token-major flat slot axis (j = t*k + r) on
    # lanes, zero-padded to a multiple of 128.  Padded slots get expert id -1
    # so they can never match a real expert row in phase 2.
    N = T * k
    N_pad = _round_up(N, _LANE)
    tkp_flat = tkp.reshape(1, N)
    tki_flat = tki.reshape(1, N)
    if N_pad != N:
        tkp_flat = jnp.pad(tkp_flat, ((0, 0), (0, N_pad - N)))
        tki_flat = jnp.pad(tki_flat, ((0, 0), (0, N_pad - N)), constant_values=-1)

    vmem = pl.BlockSpec(memory_space=pltpu.MemorySpace.VMEM)
    expert_probs, expert_indices = pl.pallas_call(
        functools.partial(_capacity_select_kernel, k=k),
        out_shape=(
            jax.ShapeDtypeStruct((E, C), jnp.float32),
            jax.ShapeDtypeStruct((E, C), jnp.int32),
        ),
        in_specs=[vmem, vmem],
        out_specs=(vmem, vmem),
        compiler_params=pltpu.CompilerParams(vmem_limit_bytes=vmem_limit),
    )(tkp_flat, tki_flat)

    return logits, probs, expert_probs, expert_indices


# --------------------------------------------------------------------------
# Pure-numpy reference of the PyTorch routing loop (for the sanity check)
# --------------------------------------------------------------------------
def _routing_reference_from_probs(probs, k, C):
    probs = np.asarray(probs, np.float32)
    T, E = probs.shape
    order = np.argsort(-probs, axis=-1, kind="stable")[:, :k]
    topk_ids = order
    topk_probs = np.take_along_axis(probs, order, axis=-1)
    flat_ids = topk_ids.reshape(-1)
    flat_probs = topk_probs.reshape(-1)
    flat_tok = np.repeat(np.arange(T), k)
    ep = np.zeros((E, C), np.float32)
    ei = np.full((E, C), -1, np.int32)
    for e in range(E):
        sel = np.nonzero(flat_ids == e)[0]
        if sel.size == 0:
            continue
        ordr = np.argsort(-flat_probs[sel], kind="stable")
        keep = min(C, sel.size)
        ep[e, :keep] = flat_probs[sel][ordr[:keep]]
        ei[e, :keep] = flat_tok[sel][ordr[:keep]]
    return ep, ei


if __name__ == "__main__":
    # Small shapes consistent with the module: x is (num_tokens, d_model).
    T, D, E = 16, 32, 8
    k, expert_capacity = 2, 4

    key = jax.random.PRNGKey(0)
    kx, kw, kb = jax.random.split(key, 3)
    x = jax.random.normal(kx, (T, D), dtype=jnp.float32)
    # Deterministic nn.Linear-style init: U(-1/sqrt(D), 1/sqrt(D)).
    bound = 1.0 / np.sqrt(D)
    w = jax.random.uniform(kw, (D, E), jnp.float32, -bound, bound)  # (d_model, num_experts)
    b = jax.random.uniform(kb, (E,), jnp.float32, -bound, bound)

    logits, probs, expert_probs, expert_indices = jax.block_until_ready(
        topk_router(x, w, b, k, expert_capacity))

    # ---- sanity checks against a pure reference ----
    logits_ref = np.asarray(x, np.float32) @ np.asarray(w) + np.asarray(b)
    z = logits_ref - logits_ref.max(-1, keepdims=True)
    ez = np.exp(z)
    probs_ref = ez / ez.sum(-1, keepdims=True)
    np.testing.assert_allclose(np.asarray(logits), logits_ref, atol=1e-4, rtol=1e-4)
    np.testing.assert_allclose(np.asarray(probs), probs_ref, atol=1e-4, rtol=1e-4)

    ep_ref, ei_ref = _routing_reference_from_probs(probs, k, expert_capacity)
    np.testing.assert_allclose(np.asarray(expert_probs), ep_ref, atol=1e-6, rtol=1e-6)
    np.testing.assert_array_equal(np.asarray(expert_indices), ei_ref)

    print("KERNEL_OK")
</pallas_src>

<mosaic_0001>
module attributes {stable_mosaic.version = 11 : i64} {
  func.func @_logits_topk_kernel(%arg0: i32, %arg1: memref<16x32xf32, #tpu.memory_space<vmem>>, %arg2: memref<32x128xf32, #tpu.memory_space<vmem>>, %arg3: memref<1x128xf32, #tpu.memory_space<vmem>>, %arg4: memref<16x128xf32, #tpu.memory_space<vmem>>, %arg5: memref<16x128xf32, #tpu.memory_space<vmem>>, %arg6: memref<16x2xf32, #tpu.memory_space<vmem>>, %arg7: memref<16x2xi32, #tpu.memory_space<vmem>>) attributes {dimension_semantics = [#tpu.dimension_semantics<parallel>], iteration_bounds = array<i64: 1>, scalar_prefetch = 0 : i64, scratch_operands = 0 : i64, tpu.core_type = #tpu.core_type<tc>, window_params = [{transform_indices = @transform_0, window_bounds = array<i64: 16, 32>}, {pipeline_mode = #tpu.pipeline_mode<synchronous>, transform_indices = @transform_1, window_bounds = array<i64: 32, 128>}, {pipeline_mode = #tpu.pipeline_mode<synchronous>, transform_indices = @transform_2, window_bounds = array<i64: 1, 128>}, {transform_indices = @transform_3, window_bounds = array<i64: 16, 128>}, {transform_indices = @transform_4, window_bounds = array<i64: 16, 128>}, {transform_indices = @transform_5, window_bounds = array<i64: 16, 2>}, {transform_indices = @transform_6, window_bounds = array<i64: 16, 2>}]} {
    %c0 = arith.constant 0 : index
    %c0_0 = arith.constant 0 : index
    %0 = vector.load %arg1[%c0, %c0_0] : memref<16x32xf32, #tpu.memory_space<vmem>>, vector<16x32xf32>
    %c0_1 = arith.constant 0 : index
    %c0_2 = arith.constant 0 : index
    %1 = vector.load %arg2[%c0_1, %c0_2] : memref<32x128xf32, #tpu.memory_space<vmem>>, vector<32x128xf32>
    %cst = arith.constant dense<0.000000e+00> : vector<16x128xf32>
    %2 = tpu.matmul %0, %1, %cst {dimension_numbers = #tpu.dot_dimension_numbers<[1], [0], [0], [1], [0, 0, 1, 1], [], []>} : vector<16x32xf32>, vector<32x128xf32>, vector<16x128xf32> -> vector<16x128xf32>
    %c0_3 = arith.constant 0 : index
    %c0_4 = arith.constant 0 : index
    %3 = vector.load %arg3[%c0_3, %c0_4] : memref<1x128xf32, #tpu.memory_space<vmem>>, vector<1x128xf32>
    %4 = vector.broadcast %3 : vector<1x128xf32> to vector<16x128xf32>
    %5 = arith.addf %2, %4 : vector<16x128xf32>
    %c0_5 = arith.constant 0 : index
    %c0_6 = arith.constant 0 : index
    %6 = vector.load %arg4[%c0_5, %c0_6] : memref<16x128xf32, #tpu.memory_space<vmem>>, vector<16x128xf32>
    tpu.vector_store %arg4[%c0_5, %c0_6], %5 {strides = array<i32>} : memref<16x128xf32, #tpu.memory_space<vmem>>, vector<16x128xf32>,
    %cst_7 = arith.constant dense<0xFF800000> : vector<16xf32>
    %7 = vector.multi_reduction <maximumf>, %5, %cst_7 [1] : vector<16x128xf32> to vector<16xf32>
    %8 = vector.shape_cast %7 : vector<16xf32> to vector<16x1xf32>
    %9 = vector.broadcast %8 : vector<16x1xf32> to vector<16x128xf32>
    %10 = arith.subf %5, %9 : vector<16x128xf32>
    %11 = math.exp %10 : vector<16x128xf32>
    %cst_8 = arith.constant dense<0.000000e+00> : vector<16xf32>
    %12 = vector.multi_reduction <add>, %11, %cst_8 [1] : vector<16x128xf32> to vector<16xf32>
    %13 = vector.shape_cast %12 : vector<16xf32> to vector<16x1xf32>
    %14 = vector.broadcast %13 : vector<16x1xf32> to vector<16x128xf32>
    %15 = arith.divf %11, %14 : vector<16x128xf32>
    %c0_9 = arith.constant 0 : index
    %c0_10 = arith.constant 0 : index
    %16 = vector.load %arg5[%c0_9, %c0_10] : memref<16x128xf32, #tpu.memory_space<vmem>>, vector<16x128xf32>
    tpu.vector_store %arg5[%c0_9, %c0_10], %15 {strides = array<i32>} : memref<16x128xf32, #tpu.memory_space<vmem>>, vector<16x128xf32>,
    %17 = tpu.iota {dimensions = array<i32: 1>} : vector<16x128xi32>
    %18 = tpu.iota {dimensions = array<i32: 1>} : vector<16x2xi32>
    %false = arith.constant false
    %19 = vector.broadcast %false : i1 to vector<16x128xi1>
    %cst_11 = arith.constant 0.000000e+00 : f32
    %20 = vector.broadcast %cst_11 : f32 to vector<16x2xf32>
    %c0_i32 = arith.constant 0 : i32
    %21 = vector.broadcast %c0_i32 : i32 to vector<16x2xi32>
    %cst_12 = arith.constant -1.000000e+00 : f32
    %22 = vector.broadcast %cst_12 : f32 to vector<16x128xf32>
    %23 = arith.select %19, %22, %15 : vector<16x128xi1>, vector<16x128xf32>
    %cst_13 = arith.constant dense<0xFF800000> : vector<16xf32>
    %24 = vector.multi_reduction <maximumf>, %23, %cst_13 [1] : vector<16x128xf32> to vector<16xf32>
    %25 = vector.shape_cast %24 : vector<16xf32> to vector<16x1xf32>
    %26 = vector.broadcast %25 : vector<16x1xf32> to vector<16x128xf32>
    %27 = arith.cmpf oeq, %23, %26 : vector<16x128xf32>
    %c128_i32 = arith.constant 128 : i32
    %28 = vector.broadcast %c128_i32 : i32 to vector<16x128xi32>
    %29 = arith.select %27, %17, %28 : vector<16x128xi1>, vector<16x128xi32>
    %cst_14 = arith.constant dense<2147483647> : vector<16xi32>
    %30 = vector.multi_reduction <minsi>, %29, %cst_14 [1] : vector<16x128xi32> to vector<16xi32>
    %31 = vector.shape_cast %30 : vector<16xi32> to vector<16x1xi32>
    %32 = vector.broadcast %31 : vector<16x1xi32> to vector<16x128xi32>
    %33 = arith.cmpi eq, %17, %32 : vector<16x128xi32>
    %34 = arith.ori %19, %33 : vector<16x128xi1>
    %c0_i32_15 = arith.constant 0 : i32
    %35 = vector.broadcast %c0_i32_15 : i32 to vector<16x2xi32>
    %36 = arith.cmpi eq, %18, %35 : vector<16x2xi32>
    %37 = vector.shape_cast %25 : vector<16x1xf32> to vector<16x1xf32>
    %38 = vector.broadcast %37 : vector<16x1xf32> to vector<16x2xf32>
    %39 = arith.select %36, %38, %20 : vector<16x2xi1>, vector<16x2xf32>
    %c0_i32_16 = arith.constant 0 : i32
    %40 = vector.broadcast %c0_i32_16 : i32 to vector<16x2xi32>
    %41 = arith.cmpi eq, %18, %40 : vector<16x2xi32>
    %42 = vector.shape_cast %31 : vector<16x1xi32> to vector<16x1xi32>
    %43 = vector.broadcast %42 : vector<16x1xi32> to vector<16x2xi32>
    %44 = arith.select %41, %43, %21 : vector<16x2xi1>, vector<16x2xi32>
    %cst_17 = arith.constant -1.000000e+00 : f32
    %45 = vector.broadcast %cst_17 : f32 to vector<16x128xf32>
    %46 = arith.select %34, %45, %15 : vector<16x128xi1>, vector<16x128xf32>
    %cst_18 = arith.constant dense<0xFF800000> : vector<16xf32>
    %47 = vector.multi_reduction <maximumf>, %46, %cst_18 [1] : vector<16x128xf32> to vector<16xf32>
    %48 = vector.shape_cast %47 : vector<16xf32> to vector<16x1xf32>
    %49 = vector.broadcast %48 : vector<16x1xf32> to vector<16x128xf32>
    %50 = arith.cmpf oeq, %46, %49 : vector<16x128xf32>
    %c128_i32_19 = arith.constant 128 : i32
    %51 = vector.broadcast %c128_i32_19 : i32 to vector<16x128xi32>
    %52 = arith.select %50, %17, %51 : vector<16x128xi1>, vector<16x128xi32>
    %cst_20 = arith.constant dense<2147483647> : vector<16xi32>
    %53 = vector.multi_reduction <minsi>, %52, %cst_20 [1] : vector<16x128xi32> to vector<16xi32>
    %54 = vector.shape_cast %53 : vector<16xi32> to vector<16x1xi32>
    %c1_i32 = arith.constant 1 : i32
    %55 = vector.broadcast %c1_i32 : i32 to vector<16x2xi32>
    %56 = arith.cmpi eq, %18, %55 : vector<16x2xi32>
    %57 = vector.shape_cast %48 : vector<16x1xf32> to vector<16x1xf32>
    %58 = vector.broadcast %57 : vector<16x1xf32> to vector<16x2xf32>
    %59 = arith.select %56, %58, %39 : vector<16x2xi1>, vector<16x2xf32>
    %c1_i32_21 = arith.constant 1 : i32
    %60 = vector.broadcast %c1_i32_21 : i32 to vector<16x2xi32>
    %61 = arith.cmpi eq, %18, %60 : vector<16x2xi32>
    %62 = vector.shape_cast %54 : vector<16x1xi32> to vector<16x1xi32>
    %63 = vector.broadcast %62 : vector<16x1xi32> to vector<16x2xi32>
    %64 = arith.select %61, %63, %44 : vector<16x2xi1>, vector<16x2xi32>
    %c0_22 = arith.constant 0 : index
    %c0_23 = arith.constant 0 : index
    %65 = vector.load %arg6[%c0_22, %c0_23] : memref<16x2xf32, #tpu.memory_space<vmem>>, vector<16x2xf32>
    tpu.vector_store %arg6[%c0_22, %c0_23], %59 {strides = array<i32>} : memref<16x2xf32, #tpu.memory_space<vmem>>, vector<16x2xf32>,
    %c0_24 = arith.constant 0 : index
    %c0_25 = arith.constant 0 : index
    %66 = vector.load %arg7[%c0_24, %c0_25] : memref<16x2xi32, #tpu.memory_space<vmem>>, vector<16x2xi32>
    tpu.vector_store %arg7[%c0_24, %c0_25], %64 {strides = array<i32>} : memref<16x2xi32, #tpu.memory_space<vmem>>, vector<16x2xi32>,
    return
  }
  func.func @transform_0(%arg0: i32) -> (i32, i32) {
    %c0_i32 = arith.constant 0 : i32
    %c0_i32_0 = arith.constant 0 : i32
    return %arg0, %c0_i32 : i32, i32
  }
  func.func @transform_1(%arg0: i32) -> (i32, i32) {
    %c0_i32 = arith.constant 0 : i32
    %c0_i32_0 = arith.constant 0 : i32
    %c0_i32_1 = arith.constant 0 : i32
    return %c0_i32, %c0_i32_0 : i32, i32
  }
  func.func @transform_2(%arg0: i32) -> (i32, i32) {
    %c0_i32 = arith.constant 0 : i32
    %c0_i32_0 = arith.constant 0 : i32
    %c0_i32_1 = arith.constant 0 : i32
    return %c0_i32, %c0_i32_0 : i32, i32
  }
  func.func @transform_3(%arg0: i32) -> (i32, i32) {
    %c0_i32 = arith.constant 0 : i32
    %c0_i32_0 = arith.constant 0 : i32
    return %arg0, %c0_i32 : i32, i32
  }
  func.func @transform_4(%arg0: i32) -> (i32, i32) {
    %c0_i32 = arith.constant 0 : i32
    %c0_i32_0 = arith.constant 0 : i32
    return %arg0, %c0_i32 : i32, i32
  }
  func.func @transform_5(%arg0: i32) -> (i32, i32) {
    %c0_i32 = arith.constant 0 : i32
    %c0_i32_0 = arith.constant 0 : i32
    return %arg0, %c0_i32 : i32, i32
  }
  func.func @transform_6(%arg0: i32) -> (i32, i32) {
    %c0_i32 = arith.constant 0 : i32
    %c0_i32_0 = arith.constant 0 : i32
    return %arg0, %c0_i32 : i32, i32
  }
}

</mosaic_0001>

<llo_original>
// kernel: tpu_custom_call.1
$region0: #{tpu_custom_call.1}
  #allocation0 [shape = 'u32[]', space=smem, size = 0x4, offset = 0x4, fixed_abs, tag = 'smem constant byte address 0x4 - core index']
  #allocation1 [shape = 'u32[144,128]{1,0:T(1,128)}', space=vmem, size = 0x12000, scoped, tag = 'internal scratch']
  %s0 = inlined_call_operand.hbm [shape: f32[16,32], index: 0, kind: input, shape index: {}]
  %s1 = inlined_call_operand.hbm [shape: f32[32,128], index: 1, kind: input, shape index: {}]
  %s2 = inlined_call_operand.vmem [shape: f32[1,128], index: 2, kind: input, shape index: {}]
  %s3 = inlined_call_operand.hbm [shape: f32[16,128], index: 3, kind: output, shape index: {0}]
  %s4 = inlined_call_operand.hbm [shape: f32[16,128], index: 4, kind: output, shape index: {1}]
  %s5 = inlined_call_operand.vmem [shape: f32[16,2], index: 5, kind: output, shape index: {2}]
  %s6 = inlined_call_operand.vmem [shape: s32[16,2], index: 6, kind: output, shape index: {3}]
  %7 = xla_tuple %s3, %s4, %s5, %s6
  %s8 = sld [smem:[#allocation0]]
  $region54: #{tpu_custom_call.1} parent=0
    _
  %s10 = ssub.s32 1, %s8
  %s11 = scalar_select 0, %s10, %s8
  $region1: #{tpu_custom_call.1} parent=0
    #allocation2 [shape = 'u8[8192]{0}', space=vmem, size = 0x2000, scoped, tag = 'input window, operand 0, single buffered']
    #allocation3 [shape = 's32[1]{0}', space=sflag, size = 0x4, scoped, tag = 'scoped memory for tpu_custom_call.1']
    #allocation4 [shape = 's32[1]{0}', space=sflag, size = 0x4, scoped, tag = 'scoped memory for tpu_custom_call.1']
    #allocation5 [shape = 'u8[16384]{0}', space=vmem, size = 0x4000, scoped, tag = 'input window, operand 1, single buffered']
    #allocation6 [shape = 's32[1]{0}', space=sflag, size = 0x4, scoped, tag = 'scoped memory for tpu_custom_call.1']
    #allocation7 [shape = 'u8[8192]{0}', space=vmem, size = 0x2000, scoped, tag = 'output window, operand 0, single buffered']
    #allocation8 [shape = 'u8[8192]{0}', space=vmem, size = 0x2000, scoped, tag = 'output window, operand 1, single buffered']
    #allocation9 [shape = 's32[1]{0}', space=sflag, size = 0x4, scoped, tag = 'scoped memory for tpu_custom_call.1']
    %12 = vsyncpa [#allocation3], 0
    %13 = vsyncpa [#allocation6], 0
    %14 = vsyncpa [#allocation4], 0
    %15 = vsyncpa [#allocation9], 0
    // Predicated region
    $region2: #{tpu_custom_call.1} parent=1 // pred_check
      _
    $region3: #{tpu_custom_call.1} parent=1 // pred_check_branch
      %17 = sbr.rel (0) target = $region5
    $region4: #{tpu_custom_call.1} parent=1 // pred_region
      %s19 = ssub.s32 256, 256
      %20 = vsyncadd [#allocation3], %s19
      %s21 = sshll.u32 [#allocation2], 4
      %s22 = int_to_ptr.vmem [resolvable:$true] %s21
      %27 = dma.hbm_to_vmem [thread:$0]  %s0, 256, %s22, [#allocation3], 128, 128, 8
    $region5: #{tpu_custom_call.1} parent=1 // pred_fallthru
      _
    // Predicated region
    $region6: #{tpu_custom_call.1} parent=1 // pred_check
      _
    $region7: #{tpu_custom_call.1} parent=1 // pred_check_branch
      %29 = sbr.rel (0) target = $region9
    $region8: #{tpu_custom_call.1} parent=1 // pred_region
      %s31 = ssub.s32 512, 512
      %32 = vsyncadd [#allocation6], %s31
      %s33 = sshll.u32 [#allocation5], 4
      %s34 = int_to_ptr.vmem [resolvable:$true] %s33
      %39 = dma.hbm_to_vmem [thread:$0]  %s1, 512, %s34, [#allocation6], 128, 128, 8
    $region9: #{tpu_custom_call.1} parent=1 // pred_fallthru
      _
    // Predicated region
    $region10: #{tpu_custom_call.1} parent=1 // pred_check
      _
    $region11: #{tpu_custom_call.1} parent=1 // pred_check_branch
      %41 = sbr.rel (0) target = $region13
    $region12: #{tpu_custom_call.1} parent=1 // pred_region
      _
    $region13: #{tpu_custom_call.1} parent=1 // pred_fallthru
      _
    // Predicated region
    $region14: #{tpu_custom_call.1} parent=1 // pred_check
      _
    $region15: #{tpu_custom_call.1} parent=1 // pred_check_branch
      %43 = sbr.rel (0) target = $region17
    $region16: #{tpu_custom_call.1} parent=1 // pred_region
      %44 = dma.done [#allocation3], 256
    $region17: #{tpu_custom_call.1} parent=1 // pred_fallthru
      _
    // Predicated region
    $region18: #{tpu_custom_call.1} parent=1 // pred_check
      _
    $region19: #{tpu_custom_call.1} parent=1 // pred_check_branch
      %46 = sbr.rel (0) target = $region21
    $region20: #{tpu_custom_call.1} parent=1 // pred_region
      %47 = dma.done [#allocation6], 512
    $region21: #{tpu_custom_call.1} parent=1 // pred_fallthru
      _
    %v48 = vld [vmem:[#allocation2] sm:$0xff]
    %v49 = vld [vmem:[#allocation2 + $0x8] sm:$0xff]
    %v50 = vld [vmem:[#allocation5] sm:$0xff]
    %v51 = vld [vmem:[#allocation5 + $0x8] sm:$0xff]
    %v52 = vld [vmem:[#allocation5 + $0x10] sm:$0xff]
    %v53 = vld [vmem:[#allocation5 + $0x18] sm:$0xff]
    %v54 = vld [vmem:[%s2] sm:$0x1]
    %v56 = vlaneseq
    %v57 = vshrl.u32 %v56, 7
    %v58 = vsub.s32 0, %v57
    %v59 = vrot.slane %v54, %v58
    %vm61 = vcmask 261120
    %v63 = vsel %vm61, %v48, 0
    %v66 = vsel %vm61, %v49, 0
    %68 = vmatprep.subr.mxu0 0.0
    %69 = vmatpush1.msra.mxu0 %v50
    %70 = vmatprep.subr.mxu0 0.0
    %71 = vmatpush1.msra.mxu0 %v51
    %72 = vmatprep.subr.mxu0 0.0
    %73 = vmatpush1.msra.mxu0 %v52
    %74 = vmatprep.subr.mxu0 0.0
    %75 = vmatpush1.msra.mxu0 %v53
    %76 = vmatprep.subr.mxu0 0.0
    %77 = vmatpush1.msra.mxu0 0.0
    %78 = vmatprep.subr.mxu0 0.0
    %79 = vmatpush1.msra.mxu0 0.0
    %80 = vmatprep.subr.mxu0 0.0
    %81 = vmatpush1.msra.mxu0 0.0
    %82 = vmatprep.subr.mxu0 0.0
    %83 = vmatpush1.msra.mxu0 0.0
    %84 = vmatprep.subr.mxu0 0.0
    %85 = vmatpush1.msra.mxu0 0.0
    %86 = vmatprep.subr.mxu0 0.0
    %87 = vmatpush1.msra.mxu0 0.0
    %88 = vmatprep.subr.mxu0 0.0
    %89 = vmatpush1.msra.mxu0 0.0
    %90 = vmatprep.subr.mxu0 0.0
    %91 = vmatpush1.msra.mxu0 0.0
    %92 = vmatprep.subr.mxu0 0.0
    %93 = vmatpush1.msra.mxu0 0.0
    %94 = vmatprep.subr.mxu0 0.0
    %95 = vmatpush1.msra.mxu0 0.0
    %96 = vmatprep.subr.mxu0 0.0
    %97 = vmatpush1.msra.mxu0 0.0
    %98 = vmatprep.subr.mxu0 0.0
    %99 = vmatpush1.msra.mxu0 0.0
    %100 = vmatprep.subr.mxu0 0.0
    %101 = vmatpush1.msra.mxu0 0.0
    %102 = vmatprep.subr.mxu0 0.0
    %103 = vmatpush1.msra.mxu0 0.0
    %104 = vmatprep.subr.mxu0 0.0
    %105 = vmatpush1.msra.mxu0 0.0
    %106 = vmatprep.subr.mxu0 0.0
    %107 = vmatpush1.msra.mxu0 0.0
    %108 = vmatprep.subr.mxu0 0.0
    %109 = vmatpush1.msra.mxu0 0.0
    %110 = vmatprep.subr.mxu0 0.0
    %111 = vmatpush1.msra.mxu0 0.0
    %112 = vmatprep.subr.mxu0 0.0
    %113 = vmatpush1.msra.mxu0 0.0
    %114 = vmatprep.subr.mxu0 0.0
    %115 = vmatpush1.msra.mxu0 0.0
    %116 = vmatprep.subr.mxu0 0.0
    %117 = vmatpush1.msra.mxu0 0.0
    %118 = vmatprep.subr.mxu0 0.0
    %119 = vmatpush1.msra.mxu0 0.0
    %120 = vmatprep.subr.mxu0 0.0
    %121 = vmatpush1.msra.mxu0 0.0
    %122 = vmatprep.subr.mxu0 0.0
    %123 = vmatpush1.msra.mxu0 0.0
    %124 = vmatprep.subr.mxu0 0.0
    %125 = vmatpush1.msra.mxu0 0.0
    %126 = vmatprep.subr.mxu0 0.0
    %127 = vmatpush1.msra.mxu0 0.0
    %128 = vmatprep.subr.mxu0 0.0
    %129 = vmatpush1.msra.mxu0 0.0
    %130 = vmatprep.subr.mxu0 0.0
    %131 = vmatpush1.msra.mxu0 0.0
    %132 = vmatprep.mubr.f32.mxu0 0.0
    %133 = vmatmul.mubr.f32.gmra.mrb[0].mxu0 %v63
    %v134 = vpop.f32.mrb[0].mxu0
    %v135 = vadd.f32 %v59, %v134
    %v136 = vpop.f32.mrb[0].mxu0
    %137 = vmatprep.mubr.f32.mxu0 0.0
    %138 = vmatmul.mubr.f32.gmra.mrb[0].mxu0 %v66
    %v139 = vpop.f32.mrb[0].mxu0
    %v140 = vadd.f32 %v59, %v139
    %v141 = vpop.f32.mrb[0].mxu0
    %142 = vdwg.mxu0
    %143 = vst [vmem:[#allocation7] sm:$0xff] %v135
    %144 = vst [vmem:[#allocation7 + $0x8] sm:$0xff] %v140
    %145 = vmax.xlane.f32.xlu0 %v135
    %v146 = vpop.xlane.xlu0 %145
    %147 = vmax.xlane.f32.xlu0 %v140
    %v148 = vpop.xlane.xlu0 %147
    %v149 = vsub.f32 %v135, %v146
    %v150 = vsub.f32 %v140, %v148
    %v151 = vmul.f32 %v149, 1.442695
    %v152 = vpow.pop %v151
    %v153 = vmul.f32 %v150, 1.442695
    %v154 = vpow.pop %v153
    %155 = vadd.xlane.f32.xlu0 %v152
    %v156 = vpop.xlane.xlu0 %155
    %157 = vadd.xlane.f32.xlu0 %v154
    %v158 = vpop.xlane.xlu0 %157
    %v159 = vrcp.pop %v156
    %v160 = vmul.f32 %v152, %v159
    %v161 = vrcp.pop %v158
    %v162 = vmul.f32 %v154, %v161
    %163 = vst [vmem:[#allocation8] sm:$0xff] %v160
    %164 = vst [vmem:[#allocation8 + $0x8] sm:$0xff] %v162
    %v165 = vlaneseq
    %v166 = vand.u32 %v165, 127
    %167 = vmax.xlane.f32.xlu0 %v160
    %v168 = vpop.xlane.xlu0 %167
    %169 = vmax.xlane.f32.xlu0 %v162
    %v170 = vpop.xlane.xlu0 %169
    %vm171 = vcmp.eq.f32.partialorder %v160, %v168
    %vm172 = vcmp.eq.f32.partialorder %v162, %v170
    %v173 = vsel %vm171, %v166, 128
    %v174 = vsel %vm172, %v166, 128
    %v175 = vand.u32 %v173, 65535
    %v176 = vshra.s32 %v173, 16
    %v177 = vcvt.s32.f32 %v175
    %v178 = vcvt.s32.f32 %v176
    %179 = vmin.xlane.f32.xlu0 %v178
    %v180 = vpop.xlane.xlu0 %179
    %vm181 = vcmp.eq.f32.partialorder %v178, %v180
    %v182 = vsel %vm181, %v177, inf
    %183 = vmin.xlane.f32.xlu0 %v182
    %v184 = vpop.xlane.xlu0 %183
    %v185 = vcvt.f32.s32 %v184
    %v186 = vcvt.f32.s32 %v180
    %v187 = vshll.u32 %v186, 16
    %v188 = vadd.s32 %v187, %v185
    %v189 = vand.u32 %v174, 65535
    %v190 = vshra.s32 %v174, 16
    %v191 = vcvt.s32.f32 %v189
    %v192 = vcvt.s32.f32 %v190
    %193 = vmin.xlane.f32.xlu0 %v192
    %v194 = vpop.xlane.xlu0 %193
    %vm195 = vcmp.eq.f32.partialorder %v192, %v194
    %v196 = vsel %vm195, %v191, inf
    %197 = vmin.xlane.f32.xlu0 %v196
    %v198 = vpop.xlane.xlu0 %197
    %v199 = vcvt.f32.s32 %v198
    %v200 = vcvt.f32.s32 %v194
    %v201 = vshll.u32 %v200, 16
    %v202 = vadd.s32 %v201, %v199
    %vm203 = vcmp.eq.s32.totalorder %v166, %v188
    %vm204 = vcmp.eq.s32.totalorder %v166, %v202
    %vm205 = vcmp.eq.s32.totalorder %v166, 0
    %v206 = vsel %vm205, %v168, 0.0
    %v207 = vsel %vm205, %v170, 0.0
    %v208 = vsel %vm205, %v188, 0
    %v209 = vsel %vm205, %v202, 0
    %v210 = vsel %vm203, -1.0, %v160
    %v211 = vsel %vm204, -1.0, %v162
    %212 = vmax.xlane.f32.xlu0 %v210
    %v213 = vpop.xlane.xlu0 %212
    %214 = vmax.xlane.f32.xlu0 %v211
    %v215 = vpop.xlane.xlu0 %214
    %vm216 = vcmp.eq.f32.partialorder %v210, %v213
    %vm217 = vcmp.eq.f32.partialorder %v211, %v215
    %v218 = vsel %vm216, %v166, 128
    %v219 = vsel %vm217, %v166, 128
    %v220 = vand.u32 %v218, 65535
    %v221 = vshra.s32 %v218, 16
    %v222 = vcvt.s32.f32 %v220
    %v223 = vcvt.s32.f32 %v221
    %224 = vmin.xlane.f32.xlu0 %v223
    %v225 = vpop.xlane.xlu0 %224
    %vm226 = vcmp.eq.f32.partialorder %v223, %v225
    %v227 = vsel %vm226, %v222, inf
    %228 = vmin.xlane.f32.xlu0 %v227
    %v229 = vpop.xlane.xlu0 %228
    %v230 = vcvt.f32.s32 %v229
    %v231 = vcvt.f32.s32 %v225
    %v232 = vshll.u32 %v231, 16
    %v233 = vadd.s32 %v232, %v230
    %v234 = vand.u32 %v219, 65535
    %v235 = vshra.s32 %v219, 16
    %v236 = vcvt.s32.f32 %v234
    %v237 = vcvt.s32.f32 %v235
    %238 = vmin.xlane.f32.xlu0 %v237
    %v239 = vpop.xlane.xlu0 %238
    %vm240 = vcmp.eq.f32.partialorder %v237, %v239
    %v241 = vsel %vm240, %v236, inf
    %242 = vmin.xlane.f32.xlu0 %v241
    %v243 = vpop.xlane.xlu0 %242
    %v244 = vcvt.f32.s32 %v243
    %v245 = vcvt.f32.s32 %v239
    %v246 = vshll.u32 %v245, 16
    %v247 = vadd.s32 %v246, %v244
    %vm248 = vcmp.eq.s32.totalorder %v166, 1
    %v249 = vsel %vm248, %v213, %v206
    %v250 = vsel %vm248, %v215, %v207
    %v251 = vsel %vm248, %v233, %v208
    %v252 = vsel %vm248, %v247, %v209
    %vm253 = vcmask 15360
    %254 = vst.msk [vmem:[%s5] sm:$0xff] %vm253, %v249
    %255 = vst.msk [vmem:[%s5 + $0x8] sm:$0xff] %vm253, %v250
    %256 = vst.msk [vmem:[%s6] sm:$0xff] %vm253, %v251
    %257 = vst.msk [vmem:[%s6 + $0x8] sm:$0xff] %vm253, %v252
    // Predicated region
    $region22: #{tpu_custom_call.1} parent=1 // pred_check
      _
    $region23: #{tpu_custom_call.1} parent=1 // pred_check_branch
      %259 = sbr.rel (0) target = $region25
    $region24: #{tpu_custom_call.1} parent=1 // pred_region
      %s261 = ssub.s32 256, 256
      %262 = vsyncadd [#allocation4], %s261
      %s263 = sshll.u32 [#allocation7], 4
      %s264 = int_to_ptr.vmem [resolvable:$true] %s263
      %269 = dma.vmem_to_hbm [thread:$0]  %s264, 256, %s3, [#allocation4], 128, 128, 8
    $region25: #{tpu_custom_call.1} parent=1 // pred_fallthru
      _
    // Predicated region
    $region26: #{tpu_custom_call.1} parent=1 // pred_check
      _
    $region27: #{tpu_custom_call.1} parent=1 // pred_check_branch
      %271 = sbr.rel (0) target = $region29
    $region28: #{tpu_custom_call.1} parent=1 // pred_region
      %s273 = ssub.s32 256, 256
      %274 = vsyncadd [#allocation9], %s273
      %s275 = sshll.u32 [#allocation8], 4
      %s276 = int_to_ptr.vmem [resolvable:$true] %s275
      %281 = dma.vmem_to_hbm [thread:$0]  %s276, 256, %s4, [#allocation9], 128, 128, 8
    $region29: #{tpu_custom_call.1} parent=1 // pred_fallthru
      _
    // Predicated region
    $region30: #{tpu_custom_call.1} parent=1 // pred_check
      _
    $region31: #{tpu_custom_call.1} parent=1 // pred_check_branch
      %283 = sbr.rel (0) target = $region33
    $region32: #{tpu_custom_call.1} parent=1 // pred_region
      _
    $region33: #{tpu_custom_call.1} parent=1 // pred_fallthru
      _
    // Predicated region
    $region34: #{tpu_custom_call.1} parent=1 // pred_check
      _
    $region35: #{tpu_custom_call.1} parent=1 // pred_check_branch
      %285 = sbr.rel (0) target = $region37
    $region36: #{tpu_custom_call.1} parent=1 // pred_region
      _
    $region37: #{tpu_custom_call.1} parent=1 // pred_fallthru
      _
    // Predicated region
    $region38: #{tpu_custom_call.1} parent=1 // pred_check
      _
    $region39: #{tpu_custom_call.1} parent=1 // pred_check_branch
      %287 = sbr.rel (0) target = $region41
    $region40: #{tpu_custom_call.1} parent=1 // pred_region
      %288 = dma.done [#allocation4], 256
    $region41: #{tpu_custom_call.1} parent=1 // pred_fallthru
      _
    // Predicated region
    $region42: #{tpu_custom_call.1} parent=1 // pred_check
      _
    $region43: #{tpu_custom_call.1} parent=1 // pred_check_branch
      %290 = sbr.rel (0) target = $region45
    $region44: #{tpu_custom_call.1} parent=1 // pred_region
      %291 = dma.done [#allocation9], 256
    $region45: #{tpu_custom_call.1} parent=1 // pred_fallthru
      _
    // Predicated region
    $region46: #{tpu_custom_call.1} parent=1 // pred_check
      _
    $region47: #{tpu_custom_call.1} parent=1 // pred_check_branch
      %293 = sbr.rel (0) target = $region49
    $region48: #{tpu_custom_call.1} parent=1 // pred_region
      _
    $region49: #{tpu_custom_call.1} parent=1 // pred_fallthru
      _
    // Predicated region
    $region50: #{tpu_custom_call.1} parent=1 // pred_check
      _
    $region51: #{tpu_custom_call.1} parent=1 // pred_check_branch
      %295 = sbr.rel (0) target = $region53
    $region52: #{tpu_custom_call.1} parent=1 // pred_region
      _
    $region53: #{tpu_custom_call.1} parent=1 // pred_fallthru
      _
    %296 = vsyncpa [#allocation3], 1
    %297 = vsyncpa [#allocation6], 1
    %298 = vsyncpa [#allocation4], 1
    %299 = vsyncpa [#allocation9], 1

</llo_original>
